<compile_context>
chip_gen: v7x
topology: tpu7x:2x2x1
jax: 0.10.0
libtpu: 0.0.40
codegen_flags: <defaults>
</compile_context>

<pallas_src>
import jax
import jax.numpy as jnp
from jax import lax
from jax.experimental import pallas as pl
from jax.experimental.pallas import tpu as pltpu

VMEM_LIMIT = 48 * 1024 * 1024


# ---------------------------------------------------------------------------
# Trace-time plans / weight folding
# ---------------------------------------------------------------------------

def build_convT_plan(stride):
    """Sub-pixel plan for ConvTranspose2d(k=3, pad=1, output_padding=stride-1).

    plan[ph_h*sw + ph_w] = [(kh, kw, dh, dw)] with
        y[m_h*sh+ph_h, m_w*sw+ph_w] += x[m_h+dh, m_w+dw] @ K[kh, kw]
    """
    sh, sw = stride
    plan = []
    for ph_h in range(sh):
        for ph_w in range(sw):
            taps = []
            for kh in range(3):
                dh, rh = divmod(ph_h + 1 - kh, sh)
                if rh:
                    continue
                for kw in range(3):
                    dw, rw = divmod(ph_w + 1 - kw, sw)
                    if rw:
                        continue
                    taps.append((kh, kw, dh, dw))
            plan.append(taps)
    dhs = sorted({dh for taps in plan for (_, _, dh, _) in taps})
    dws = sorted({dw for taps in plan for (_, _, _, dw) in taps})
    return plan, dhs, dws


def build_convT_weights(wT, stride):
    """(Cin, Cout, 3, 3) ConvTranspose2d weight -> (ndw, ndh*Cin, nph*Cout) bf16.

    Contraction dim folds the dh taps (im2col over rows); output dim packs all
    sub-pixel phases (lane dense).  Unused (phase, dh) blocks are zero.
    """
    Cin, Cout = int(wT.shape[0]), int(wT.shape[1])
    sh, sw = stride
    nph = sh * sw
    plan, dhs, dws = build_convT_plan(stride)
    wf = jnp.zeros((len(dws), len(dhs) * Cin, nph * Cout), jnp.float32)
    for pidx, taps in enumerate(plan):
        for kh, kw, dh, dw in taps:
            gi, wi = dhs.index(dh), dws.index(dw)
            wf = wf.at[wi, gi * Cin:(gi + 1) * Cin,
                       pidx * Cout:(pidx + 1) * Cout].set(wT[:, :, kh, kw])
    return wf.astype(jnp.bfloat16), dhs, dws


def fold_conv3x3(w_oihw):
    """PyTorch Conv2d weight (Co, Ci, 3, 3) -> (3, 3*Ci, Co), indexed by dw;
    within each dw matrix the contraction dim is (dh group major, Ci minor)."""
    co, ci = int(w_oihw.shape[0]), int(w_oihw.shape[1])
    w = jnp.transpose(w_oihw, (3, 2, 1, 0))          # (kw, kh, ci, co)
    return w.reshape(3, 3 * ci, co)


def fold_bn(gamma, beta, mean, var, eps=1e-5):
    scale = gamma / jnp.sqrt(var + eps)
    bias = beta - mean * scale
    return (scale.reshape(1, -1).astype(jnp.float32),
            bias.reshape(1, -1).astype(jnp.float32))


# ---------------------------------------------------------------------------
# In-kernel helpers (all offsets are static Python ints)
# ---------------------------------------------------------------------------

def _col_masks(hw, w):
    col = lax.broadcasted_iota(jnp.int32, (hw, 1), 0) % w
    mask_l = (col > 0).astype(jnp.float32)        # zero where col == 0   (dw=-1)
    mask_r = (col < w - 1).astype(jnp.float32)    # zero where col == W-1 (dw=+1)
    return mask_l, mask_r


def _zero_pad_bands(ref, r0, hw, off, c0, c1):
    """Zero only the scratch rows inside the conv read window [off-1, off+hw]
    that the image placed at rows [r0, r0+hw) does not cover (per dh group).
    Cheap (<= W+1 rows per band) and safe under any grid/core partitioning."""
    lo, hi = off - 1, off + hw + 1
    if r0 > lo:
        ref[pl.ds(lo, r0 - lo), c0:c1] = jnp.zeros((r0 - lo, c1 - c0),
                                                   jnp.bfloat16)
    if hi > r0 + hw:
        n = hi - (r0 + hw)
        ref[pl.ds(r0 + hw, n), c0:c1] = jnp.zeros((n, c1 - c0), jnp.bfloat16)


# ---------------------------------------------------------------------------
# Kernel 1: ConvTranspose2d + BN + ReLU  (sub-pixel, phase-packed output)
# ---------------------------------------------------------------------------

def _make_convT_kernel(H, W, Cin, Cout, sh, sw, dhs, dws):
    HW = H * W
    OFF = 2 * W

    def kernel(x_ref, w_ref, s_ref, b_ref, o_ref, xs_ref):
        mask_l, mask_r = _col_masks(HW, W)

        x2 = x_ref[0]                                   # (HW, Cin) bf16
        for g, dh in enumerate(dhs):
            r0 = OFF - dh * W
            _zero_pad_bands(xs_ref, r0, HW, OFF, g * Cin, (g + 1) * Cin)
            xs_ref[pl.ds(r0, HW), g * Cin:(g + 1) * Cin] = x2

        acc = None
        for wi, dw in enumerate(dws):
            r = jnp.dot(xs_ref[pl.ds(OFF + dw, HW), :], w_ref[wi],
                        preferred_element_type=jnp.float32)
            if dw == -1:
                r = r * mask_l
            elif dw == 1:
                r = r * mask_r
            acc = r if acc is None else acc + r

        y = jnp.maximum(acc * s_ref[...] + b_ref[...], 0.0).astype(jnp.bfloat16)
        # phase-packed (HW, nph*Cout) -> (N, H, sh, W, sw*Cout) HBM layout:
        # wrapper interleave then becomes a pure (free) reshape.
        for ph_h in range(sh):
            blk = y[:, ph_h * sw * Cout:(ph_h + 1) * sw * Cout]
            o_ref[0, :, ph_h, :, :] = blk.reshape(H, W, sw * Cout)

    return kernel


def conv_transpose_bn_relu(x_flat, H, W, wf, dhs, dws, s0t, b0t, stride, Cout):
    """x_flat: (N, H*W, Cin) bf16 -> (N, Ho*Wo, Cout) bf16 (interleaved)."""
    N, HW, Cin = x_flat.shape
    sh, sw = stride
    nph = sh * sw
    TOT = HW + 4 * W

    out = pl.pallas_call(
        _make_convT_kernel(H, W, Cin, Cout, sh, sw, dhs, dws),
        grid=(N,),
        in_specs=[
            pl.BlockSpec((1, HW, Cin), lambda n: (n, 0, 0)),
            pl.BlockSpec(wf.shape, lambda n: (0, 0, 0)),
            pl.BlockSpec((1, nph * Cout), lambda n: (0, 0)),
            pl.BlockSpec((1, nph * Cout), lambda n: (0, 0)),
        ],
        out_specs=pl.BlockSpec((1, H, sh, W, sw * Cout),
                               lambda n: (n, 0, 0, 0, 0)),
        out_shape=jax.ShapeDtypeStruct((N, H, sh, W, sw * Cout), jnp.bfloat16),
        scratch_shapes=[pltpu.VMEM((TOT, len(dhs) * Cin), jnp.bfloat16)],
        compiler_params=pltpu.CompilerParams(
            dimension_semantics=("parallel",),
            vmem_limit_bytes=VMEM_LIMIT),
    )(x_flat, wf, s0t, b0t)

    # (N, H, sh, W, sw*Cout) row-major == interleaved NHWC: metadata-only reshape.
    return out.reshape(N, sh * H * sw * W, Cout)


# ---------------------------------------------------------------------------
# Kernel 2/3: fully fused ConvBlockRes (concat + conv1 + conv2 + shortcut/res)
# ---------------------------------------------------------------------------

def _make_block_kernel(H, W, Ca, Cb, Co, has_b, has_sc, out_dtype):
    HW = H * W
    OFF = 2 * W
    Ct = Ca + Cb

    def kernel(*refs):
        it = iter(refs)
        a_ref = next(it)
        b_ref = next(it) if has_b else None
        w1_ref = next(it)                     # (3, 3*Ct, Co)
        w2_ref = next(it)                     # (3, 3*Co, Co)
        s1_ref, b1_ref = next(it), next(it)
        s2_ref, b2_ref = next(it), next(it)
        if has_sc:
            wsc_ref, bsc_ref = next(it), next(it)
        o_ref = next(it)
        xs_ref = next(it)                     # (TOT, 3*Ct) bf16
        xh_ref = next(it)                     # (TOT, 3*Co) bf16

        mask_l, mask_r = _col_masks(HW, W)

        # concat(a, b) fused into one wide scratch; im2col over dh (3 groups)
        a2 = a_ref[0]
        b2 = b_ref[0] if has_b else None
        for g, dh in enumerate((-1, 0, 1)):
            r0 = OFF - dh * W
            _zero_pad_bands(xs_ref, r0, HW, OFF, g * Ct, (g + 1) * Ct)
            xs_ref[pl.ds(r0, HW), g * Ct:g * Ct + Ca] = a2
            if has_b:
                xs_ref[pl.ds(r0, HW), g * Ct + Ca:(g + 1) * Ct] = b2

        def conv3(src_ref, w_ref):
            acc = None
            for wi, dw in enumerate((-1, 0, 1)):
                r = jnp.dot(src_ref[pl.ds(OFF + dw, HW), :], w_ref[wi],
                            preferred_element_type=jnp.float32)
                if dw == -1:
                    r = r * mask_l
                elif dw == 1:
                    r = r * mask_r
                acc = r if acc is None else acc + r
            return acc

        # conv1 (+BN+ReLU) over the fused concat
        acc1 = conv3(xs_ref, w1_ref)

        # residual: fused 1x1 shortcut (un-split weight) or identity
        if has_sc:
            cat0 = xs_ref[pl.ds(OFF, HW), Ct:2 * Ct]     # dh = 0 group
            res = jnp.dot(cat0, wsc_ref[...],
                          preferred_element_type=jnp.float32) + bsc_ref[...]
        else:
            res = a2.astype(jnp.float32)

        h = jnp.maximum(acc1 * s1_ref[...] + b1_ref[...], 0.0).astype(jnp.bfloat16)
        for g, dh in enumerate((-1, 0, 1)):
            r0 = OFF - dh * W
            _zero_pad_bands(xh_ref, r0, HW, OFF, g * Co, (g + 1) * Co)
            xh_ref[pl.ds(r0, HW), g * Co:(g + 1) * Co] = h

        # conv2 (+BN+ReLU) + residual add
        acc2 = conv3(xh_ref, w2_ref)
        y = jnp.maximum(acc2 * s2_ref[...] + b2_ref[...], 0.0)
        o_ref[0] = (y + res).astype(out_dtype)

    return kernel


def conv_block_res(a_flat, b_flat, H, W, p, out_dtype):
    """a_flat: (N, H*W, Ca) bf16; b_flat: (N, H*W, Cb) bf16 or None."""
    N, HW, Ca = a_flat.shape
    assert HW == H * W
    Co = p["s1"].shape[-1]
    has_b = b_flat is not None
    Cb = int(b_flat.shape[-1]) if has_b else 0
    Ct = Ca + Cb
    has_sc = p["wsc"] is not None
    assert p["w1"].shape == (3, 3 * Ct, Co)
    TOT = HW + 4 * W

    args, specs = [], []

    def add(arr, blk, imap):
        args.append(arr)
        specs.append(pl.BlockSpec(blk, imap))

    batch3 = lambda n: (n, 0, 0)
    const3 = lambda n: (0, 0, 0)
    const2 = lambda n: (0, 0)

    add(a_flat, (1, HW, Ca), batch3)
    if has_b:
        add(b_flat, (1, HW, Cb), batch3)
    add(p["w1"], (3, 3 * Ct, Co), const3)
    add(p["w2"], (3, 3 * Co, Co), const3)
    for k in ("s1", "b1", "s2", "b2"):
        add(p[k], (1, Co), const2)
    if has_sc:
        add(p["wsc"], (Ct, Co), const2)
        add(p["bsc"], (1, Co), const2)

    scratch = [pltpu.VMEM((TOT, 3 * Ct), jnp.bfloat16),
               pltpu.VMEM((TOT, 3 * Co), jnp.bfloat16)]

    return pl.pallas_call(
        _make_block_kernel(H, W, Ca, Cb, Co, has_b, has_sc, out_dtype),
        grid=(N,),
        in_specs=specs,
        out_specs=pl.BlockSpec((1, HW, Co), batch3),
        out_shape=jax.ShapeDtypeStruct((N, HW, Co), out_dtype),
        scratch_shapes=scratch,
        compiler_params=pltpu.CompilerParams(
            dimension_semantics=("parallel",),
            vmem_limit_bytes=VMEM_LIMIT),
    )(*args)


# ---------------------------------------------------------------------------
# Parameter preparation (BN folding, tap folding, bf16 weight casts)
# ---------------------------------------------------------------------------

def prepare_params(raw, stride):
    wT = raw["wT"]                                  # (Cin, Cout, 3, 3)
    Cout = int(wT.shape[1])
    sh, sw = stride
    nph = sh * sw
    wf, dhs, dws = build_convT_weights(wT, stride)
    s0, b0 = fold_bn(*raw["bn0"])
    p = {"wT_fold": wf, "dhs": dhs, "dws": dws, "cout": Cout,
         "s0t": jnp.tile(s0, (1, nph)), "b0t": jnp.tile(b0, (1, nph)),
         "blocks": []}

    for rb in raw["blocks"]:
        blk = {"w1": fold_conv3x3(rb["w1"]).astype(jnp.bfloat16),
               "w2": fold_conv3x3(rb["w2"]).astype(jnp.bfloat16)}
        blk["s1"], blk["b1"] = fold_bn(*rb["bn1"])
        blk["s2"], blk["b2"] = fold_bn(*rb["bn2"])
        if rb["wsc"] is not None:
            blk["wsc"] = jnp.transpose(rb["wsc"][:, :, 0, 0]).astype(jnp.bfloat16)
            blk["bsc"] = rb["bsc"].reshape(1, -1).astype(jnp.float32)
        else:
            blk["wsc"], blk["bsc"] = None, None
        p["blocks"].append(blk)
    return p


# ---------------------------------------------------------------------------
# Module forward (Pallas-backed), NCHW in / NCHW out
# ---------------------------------------------------------------------------

def res_decoder_block_forward(x_nchw, concat_nchw, params, stride):
    N, Cin, H, W = x_nchw.shape
    sh, sw = stride
    out_padding = (0, 1) if stride == (1, 2) else (1, 1)
    assert out_padding == (sh - 1, sw - 1), "sub-pixel plan needs op == stride-1"

    Co = params["cout"]
    x = jnp.transpose(x_nchw, (0, 2, 3, 1)).reshape(N, H * W, Cin)
    x = x.astype(jnp.bfloat16)

    # conv1: ConvTranspose2d + BN + ReLU (sub-pixel, phase-packed)
    y = conv_transpose_bn_relu(x, H, W, params["wT_fold"], params["dhs"],
                               params["dws"], params["s0t"], params["b0t"],
                               stride, Co)
    Ho, Wo = sh * H, sw * W

    cat = jnp.transpose(concat_nchw, (0, 2, 3, 1)).reshape(N, Ho * Wo, -1)
    cat = cat.astype(jnp.bfloat16)

    # conv2 ModuleList (skip concat fused into the first block's kernel)
    blocks = params["blocks"]
    for i, p in enumerate(blocks):
        out_dtype = jnp.float32 if i == len(blocks) - 1 else jnp.bfloat16
        b = cat if i == 0 else None
        y = conv_block_res(y, b, Ho, Wo, p, out_dtype)

    out = y.reshape(N, Ho, Wo, Co)
    return jnp.transpose(out, (0, 3, 1, 2))


# ---------------------------------------------------------------------------
# Deterministic raw parameters
# ---------------------------------------------------------------------------

def init_raw_params(key, in_channels, out_channels, n_blocks):
    keys = iter(jax.random.split(key, 128))

    def nrm(shape, s=0.2):
        return s * jax.random.normal(next(keys), shape, jnp.float32)

    def bn(c):
        gamma = 1.0 + 0.1 * jax.random.normal(next(keys), (c,), jnp.float32)
        beta = 0.1 * jax.random.normal(next(keys), (c,), jnp.float32)
        mean = 0.1 * jax.random.normal(next(keys), (c,), jnp.float32)
        var = 0.5 + 0.5 * jnp.abs(jax.random.normal(next(keys), (c,), jnp.float32))
        return gamma, beta, mean, var

    raw = {"wT": nrm((in_channels, out_channels, 3, 3)), "bn0": bn(out_channels)}
    blocks = []
    for i in range(n_blocks):
        cin = out_channels * 2 if i == 0 else out_channels
        rb = {"w1": nrm((out_channels, cin, 3, 3)), "bn1": bn(out_channels),
              "w2": nrm((out_channels, out_channels, 3, 3)),
              "bn2": bn(out_channels)}
        if cin != out_channels:
            rb["wsc"] = nrm((out_channels, cin, 1, 1))
            rb["bsc"] = nrm((out_channels,))
        else:
            rb["wsc"], rb["bsc"] = None, None
        blocks.append(rb)
    raw["blocks"] = blocks
    return raw


# ---------------------------------------------------------------------------
# Pure-JAX (XLA) reference for validation
# ---------------------------------------------------------------------------

def ref_forward(x_nchw, concat_nchw, raw, stride):
    x = jnp.transpose(x_nchw, (0, 2, 3, 1)).astype(jnp.float32)
    cat = jnp.transpose(concat_nchw, (0, 2, 3, 1)).astype(jnp.float32)
    out_padding = (0, 1) if stride == (1, 2) else (1, 1)

    def bn_relu(y, bnp):
        s, b = fold_bn(*bnp)
        return jnp.maximum(y * s.reshape(1, 1, 1, -1) + b.reshape(1, 1, 1, -1),
                           0.0)

    def conv3(z, w_oihw):
        w_hwio = jnp.transpose(w_oihw, (2, 3, 1, 0))
        return lax.conv_general_dilated(
            z, w_hwio, (1, 1), ((1, 1), (1, 1)),
            dimension_numbers=("NHWC", "HWIO", "NHWC"))

    # ConvTranspose2d as lhs-dilated correlation with the flipped kernel
    wT = raw["wT"]
    w_hwio = jnp.transpose(jnp.flip(wT, axis=(2, 3)), (2, 3, 0, 1))
    pad = ((1, 1 + out_padding[0]), (1, 1 + out_padding[1]))
    y = lax.conv_general_dilated(x, w_hwio, (1, 1), pad, lhs_dilation=stride,
                                 dimension_numbers=("NHWC", "HWIO", "NHWC"))
    y = bn_relu(y, raw["bn0"])
    y = jnp.concatenate([y, cat], axis=-1)

    for rb in raw["blocks"]:
        h = bn_relu(conv3(y, rb["w1"]), rb["bn1"])
        h = bn_relu(conv3(h, rb["w2"]), rb["bn2"])
        if rb["wsc"] is not None:
            sc = jnp.einsum("nhwc,oc->nhwo", y, rb["wsc"][:, :, 0, 0]) + rb["bsc"]
            y = h + sc
        else:
            y = h + y
    return jnp.transpose(y, (0, 3, 1, 2))


# ---------------------------------------------------------------------------
# main
# ---------------------------------------------------------------------------

if __name__ == "__main__":
    key = jax.random.PRNGKey(0)
    kx, kc, kp = jax.random.split(key, 3)

    in_channels, out_channels = 8, 4
    stride = (2, 2)
    n_blocks = 2
    N, H, W = 2, 8, 8            # NCHW input; ConvTranspose stride (2,2) -> 16x16

    x = jax.random.normal(kx, (N, in_channels, H, W), jnp.float32)
    concat_tensor = jax.random.normal(kc, (N, out_channels, 2 * H, 2 * W),
                                      jnp.float32)

    raw = init_raw_params(kp, in_channels, out_channels, n_blocks)
    params = prepare_params(raw, stride)

    out = res_decoder_block_forward(x, concat_tensor, params, stride)
    out = jax.block_until_ready(out)
    assert out.shape == (N, out_channels, 2 * H, 2 * W), out.shape

    ref = ref_forward(x, concat_tensor, raw, stride)
    # bf16 MXU operands / bf16 inter-stage activations -> relative tolerance.
    err = float(jnp.max(jnp.abs(out - ref) / (1.0 + jnp.abs(ref))))
    assert err < 5e-2, f"max normalized error {err}"

    print("KERNEL_OK")
</pallas_src>

<mosaic_0001>
module attributes {stable_mosaic.version = 11 : i64} {
  func.func @kernel(%arg0: i32, %arg1: memref<1x64x8xbf16, #tpu.memory_space<vmem>>, %arg2: memref<2x16x16xbf16, #tpu.memory_space<vmem>>, %arg3: memref<1x16xf32, #tpu.memory_space<vmem>>, %arg4: memref<1x16xf32, #tpu.memory_space<vmem>>, %arg5: memref<1x8x2x8x8xbf16, #tpu.memory_space<vmem>>, %arg6: memref<96x16xbf16, #tpu.memory_space<vmem>>) attributes {dimension_semantics = [#tpu.dimension_semantics<parallel>], iteration_bounds = array<i64: 2>, scalar_prefetch = 0 : i64, scratch_operands = 1 : i64, tpu.core_type = #tpu.core_type<tc>, window_params = [{transform_indices = @transform_0, window_bounds = array<i64: 1, 64, 8>}, {pipeline_mode = #tpu.pipeline_mode<synchronous>, transform_indices = @transform_1, window_bounds = array<i64: 2, 16, 16>}, {pipeline_mode = #tpu.pipeline_mode<synchronous>, transform_indices = @transform_2, window_bounds = array<i64: 1, 16>}, {pipeline_mode = #tpu.pipeline_mode<synchronous>, transform_indices = @transform_3, window_bounds = array<i64: 1, 16>}, {transform_indices = @transform_4, window_bounds = array<i64: 1, 8, 2, 8, 8>}]} {
    %0 = tpu.iota {dimensions = array<i32: 0>} : vector<64x1xi32>
    %c8_i32 = arith.constant 8 : i32
    %c0_i32 = arith.constant 0 : i32
    %1 = arith.cmpi eq, %c8_i32, %c0_i32 : i32
    %c1_i32 = arith.constant 1 : i32
    %2 = arith.select %1, %c1_i32, %c8_i32 : i32
    %3 = vector.broadcast %2 : i32 to vector<64x1xi32>
    %4 = arith.remsi %0, %3 : vector<64x1xi32>
    %c0_i32_0 = arith.constant 0 : i32
    %5 = vector.broadcast %c0_i32_0 : i32 to vector<64x1xi32>
    %6 = arith.cmpi ne, %4, %5 : vector<64x1xi32>
    %c0_i32_1 = arith.constant 0 : i32
    %7 = vector.broadcast %c0_i32_1 : i32 to vector<64x1xi32>
    %8 = arith.cmpi slt, %4, %7 : vector<64x1xi32>
    %c0_i32_2 = arith.constant 0 : i32
    %9 = arith.cmpi slt, %2, %c0_i32_2 : i32
    %10 = vector.broadcast %9 : i1 to vector<64x1xi1>
    %11 = vector.broadcast %10 : vector<64x1xi1> to vector<64x1xi1>
    %12 = arith.xori %8, %11 : vector<64x1xi1>
    %13 = arith.andi %12, %6 : vector<64x1xi1>
    %14 = vector.broadcast %2 : i32 to vector<64x1xi32>
    %15 = arith.addi %4, %14 : vector<64x1xi32>
    %16 = arith.select %13, %15, %4 : vector<64x1xi1>, vector<64x1xi32>
    %c7_i32 = arith.constant 7 : i32
    %17 = vector.broadcast %c7_i32 : i32 to vector<64x1xi32>
    %18 = arith.cmpi slt, %16, %17 : vector<64x1xi32>
    %19 = arith.extui %18 : vector<64x1xi1> to vector<64x1xi32>
    %20 = arith.sitofp %19 : vector<64x1xi32> to vector<64x1xf32>
    %c0 = arith.constant 0 : index
    %c0_3 = arith.constant 0 : index
    %c0_4 = arith.constant 0 : index
    %21 = vector.load %arg1[%c0, %c0_3, %c0_4] : memref<1x64x8xbf16, #tpu.memory_space<vmem>>, vector<1x64x8xbf16>
    %22 = vector.shape_cast %21 : vector<1x64x8xbf16> to vector<64x8xbf16>
    %cst = arith.constant 0.000000e+00 : bf16
    %23 = vector.broadcast %cst : bf16 to vector<1x8xbf16>
    %c15 = arith.constant 15 : index
    %c0_5 = arith.constant 0 : index
    %24 = vector.load %arg6[%c15, %c0_5] : memref<96x16xbf16, #tpu.memory_space<vmem>>, vector<1x8xbf16>
    tpu.vector_store %arg6[%c15, %c0_5], %23 {strides = array<i32>} : memref<96x16xbf16, #tpu.memory_space<vmem>>, vector<1x8xbf16>,
    %cst_6 = arith.constant 0.000000e+00 : bf16
    %25 = vector.broadcast %cst_6 : bf16 to vector<1x8xbf16>
    %c80 = arith.constant 80 : index
    %c0_7 = arith.constant 0 : index
    %26 = vector.load %arg6[%c80, %c0_7] : memref<96x16xbf16, #tpu.memory_space<vmem>>, vector<1x8xbf16>
    tpu.vector_store %arg6[%c80, %c0_7], %25 {strides = array<i32>} : memref<96x16xbf16, #tpu.memory_space<vmem>>, vector<1x8xbf16>,
    %c16 = arith.constant 16 : index
    %c0_8 = arith.constant 0 : index
    %27 = vector.load %arg6[%c16, %c0_8] : memref<96x16xbf16, #tpu.memory_space<vmem>>, vector<64x8xbf16>
    tpu.vector_store %arg6[%c16, %c0_8], %22 {strides = array<i32>} : memref<96x16xbf16, #tpu.memory_space<vmem>>, vector<64x8xbf16>,
    %cst_9 = arith.constant 0.000000e+00 : bf16
    %28 = vector.broadcast %cst_9 : bf16 to vector<9x8xbf16>
    %c72 = arith.constant 72 : index
    %c8 = arith.constant 8 : index
    %29 = vector.load %arg6[%c72, %c8] : memref<96x16xbf16, #tpu.memory_space<vmem>>, vector<9x8xbf16>
    tpu.vector_store %arg6[%c72, %c8], %28 {strides = array<i32>} : memref<96x16xbf16, #tpu.memory_space<vmem>>, vector<9x8xbf16>,
    %c8_10 = arith.constant 8 : index
    %c8_11 = arith.constant 8 : index
    %30 = vector.load %arg6[%c8_10, %c8_11] : memref<96x16xbf16, #tpu.memory_space<vmem>>, vector<64x8xbf16>
    tpu.vector_store %arg6[%c8_10, %c8_11], %22 {strides = array<i32>} : memref<96x16xbf16, #tpu.memory_space<vmem>>, vector<64x8xbf16>,
    %c16_12 = arith.constant 16 : index
    %c0_13 = arith.constant 0 : index
    %31 = vector.load %arg6[%c16_12, %c0_13] : memref<96x16xbf16, #tpu.memory_space<vmem>>, vector<64x16xbf16>
    %c0_14 = arith.constant 0 : index
    %c0_15 = arith.constant 0 : index
    %c0_16 = arith.constant 0 : index
    %32 = vector.load %arg2[%c0_14, %c0_15, %c0_16] : memref<2x16x16xbf16, #tpu.memory_space<vmem>>, vector<1x16x16xbf16>
    %33 = vector.shape_cast %32 : vector<1x16x16xbf16> to vector<16x16xbf16>
    %cst_17 = arith.constant dense<0.000000e+00> : vector<64x16xf32>
    %34 = tpu.matmul %31, %33, %cst_17 {dimension_numbers = #tpu.dot_dimension_numbers<[1], [0], [0], [1], [0, 0, 1, 1], [], []>} : vector<64x16xbf16>, vector<16x16xbf16>, vector<64x16xf32> -> vector<64x16xf32>
    %c17 = arith.constant 17 : index
    %c0_18 = arith.constant 0 : index
    %35 = vector.load %arg6[%c17, %c0_18] : memref<96x16xbf16, #tpu.memory_space<vmem>>, vector<64x16xbf16>
    %c1 = arith.constant 1 : index
    %c0_19 = arith.constant 0 : index
    %c0_20 = arith.constant 0 : index
    %36 = vector.load %arg2[%c1, %c0_19, %c0_20] : memref<2x16x16xbf16, #tpu.memory_space<vmem>>, vector<1x16x16xbf16>
    %37 = vector.shape_cast %36 : vector<1x16x16xbf16> to vector<16x16xbf16>
    %cst_21 = arith.constant dense<0.000000e+00> : vector<64x16xf32>
    %38 = tpu.matmul %35, %37, %cst_21 {dimension_numbers = #tpu.dot_dimension_numbers<[1], [0], [0], [1], [0, 0, 1, 1], [], []>} : vector<64x16xbf16>, vector<16x16xbf16>, vector<64x16xf32> -> vector<64x16xf32>
    %39 = vector.broadcast %20 : vector<64x1xf32> to vector<64x16xf32>
    %40 = arith.mulf %38, %39 : vector<64x16xf32>
    %41 = arith.addf %34, %40 : vector<64x16xf32>
    %c0_22 = arith.constant 0 : index
    %c0_23 = arith.constant 0 : index
    %42 = vector.load %arg3[%c0_22, %c0_23] : memref<1x16xf32, #tpu.memory_space<vmem>>, vector<1x16xf32>
    %43 = vector.broadcast %42 : vector<1x16xf32> to vector<64x16xf32>
    %44 = arith.mulf %41, %43 : vector<64x16xf32>
    %c0_24 = arith.constant 0 : index
    %c0_25 = arith.constant 0 : index
    %45 = vector.load %arg4[%c0_24, %c0_25] : memref<1x16xf32, #tpu.memory_space<vmem>>, vector<1x16xf32>
    %46 = vector.broadcast %45 : vector<1x16xf32> to vector<64x16xf32>
    %47 = arith.addf %44, %46 : vector<64x16xf32>
    %cst_26 = arith.constant 0.000000e+00 : f32
    %48 = vector.broadcast %cst_26 : f32 to vector<64x16xf32>
    %49 = arith.maximumf %47, %48 : vector<64x16xf32>
    %50 = arith.truncf %49 : vector<64x16xf32> to vector<64x16xbf16>
    %51 = vector.extract_strided_slice %50 {offsets = [0, 0], sizes = [64, 8], strides = [1, 1]} : vector<64x16xbf16> to vector<64x8xbf16>
    %52 = vector.shape_cast %51 : vector<64x8xbf16> to vector<8x8x8xbf16>
    %c0_27 = arith.constant 0 : index
    %c0_28 = arith.constant 0 : index
    %c0_29 = arith.constant 0 : index
    %c0_30 = arith.constant 0 : index
    %c0_31 = arith.constant 0 : index
    %53 = vector.load %arg5[%c0_27, %c0_28, %c0_29, %c0_30, %c0_31] : memref<1x8x2x8x8xbf16, #tpu.memory_space<vmem>>, vector<1x8x1x8x8xbf16>
    %54 = vector.shape_cast %53 : vector<1x8x1x8x8xbf16> to vector<8x8x8xbf16>
    %55 = vector.shape_cast %52 : vector<8x8x8xbf16> to vector<1x8x1x8x8xbf16>
    tpu.vector_store %arg5[%c0_27, %c0_28, %c0_29, %c0_30, %c0_31], %55 {strides = array<i32>} : memref<1x8x2x8x8xbf16, #tpu.memory_space<vmem>>, vector<1x8x1x8x8xbf16>,
    %56 = vector.extract_strided_slice %50 {offsets = [0, 8], sizes = [64, 8], strides = [1, 1]} : vector<64x16xbf16> to vector<64x8xbf16>
    %57 = vector.shape_cast %56 : vector<64x8xbf16> to vector<8x8x8xbf16>
    %c0_32 = arith.constant 0 : index
    %c0_33 = arith.constant 0 : index
    %c1_34 = arith.constant 1 : index
    %c0_35 = arith.constant 0 : index
    %c0_36 = arith.constant 0 : index
    %58 = vector.load %arg5[%c0_32, %c0_33, %c1_34, %c0_35, %c0_36] : memref<1x8x2x8x8xbf16, #tpu.memory_space<vmem>>, vector<1x8x1x8x8xbf16>
    %59 = vector.shape_cast %58 : vector<1x8x1x8x8xbf16> to vector<8x8x8xbf16>
    %60 = vector.shape_cast %57 : vector<8x8x8xbf16> to vector<1x8x1x8x8xbf16>
    tpu.vector_store %arg5[%c0_32, %c0_33, %c1_34, %c0_35, %c0_36], %60 {strides = array<i32>} : memref<1x8x2x8x8xbf16, #tpu.memory_space<vmem>>, vector<1x8x1x8x8xbf16>,
    return
  }
  func.func @transform_0(%arg0: i32) -> (i32, i32, i32) {
    %c0_i32 = arith.constant 0 : i32
    %c0_i32_0 = arith.constant 0 : i32
    %c0_i32_1 = arith.constant 0 : i32
    return %arg0, %c0_i32, %c0_i32_0 : i32, i32, i32
  }
  func.func @transform_1(%arg0: i32) -> (i32, i32, i32) {
    %c0_i32 = arith.constant 0 : i32
    %c0_i32_0 = arith.constant 0 : i32
    %c0_i32_1 = arith.constant 0 : i32
    %c0_i32_2 = arith.constant 0 : i32
    return %c0_i32, %c0_i32_0, %c0_i32_1 : i32, i32, i32
  }
  func.func @transform_2(%arg0: i32) -> (i32, i32) {
    %c0_i32 = arith.constant 0 : i32
    %c0_i32_0 = arith.constant 0 : i32
    %c0_i32_1 = arith.constant 0 : i32
    return %c0_i32, %c0_i32_0 : i32, i32
  }
  func.func @transform_3(%arg0: i32) -> (i32, i32) {
    %c0_i32 = arith.constant 0 : i32
    %c0_i32_0 = arith.constant 0 : i32
    %c0_i32_1 = arith.constant 0 : i32
    return %c0_i32, %c0_i32_0 : i32, i32
  }
  func.func @transform_4(%arg0: i32) -> (i32, i32, i32, i32, i32) {
    %c0_i32 = arith.constant 0 : i32
    %c0_i32_0 = arith.constant 0 : i32
    %c0_i32_1 = arith.constant 0 : i32
    %c0_i32_2 = arith.constant 0 : i32
    %c0_i32_3 = arith.constant 0 : i32
    return %arg0, %c0_i32, %c0_i32_0, %c0_i32_1, %c0_i32_2 : i32, i32, i32, i32, i32
  }
}

</mosaic_0001>

<llo_original>
// kernel: tpu_custom_call.1
$region0: #{tpu_custom_call.1}
  #allocation0 [shape = 'u32[]', space=smem, size = 0x4, offset = 0x4, fixed_abs, tag = 'smem constant byte address 0x4 - core index']
  #allocation1 [shape = 'u32[144,128]{1,0:T(1,128)}', space=vmem, size = 0x12000, scoped, tag = 'internal scratch']
  #allocation2 [shape = 'bf16[96,16]{1,0:T(16,128)(2,1)}', space=vmem, size = 0x6000, scoped, tag = 'scratch operand']
  %s0 = inlined_call_operand.vmem [shape: bf16[2,64,8], index: 0, kind: input, shape index: {}]
  %s1 = inlined_call_operand.vmem [shape: bf16[2,16,16], index: 1, kind: input, shape index: {}]
  %s2 = inlined_call_operand.vmem [shape: f32[1,16], index: 2, kind: input, shape index: {}]
  %s3 = inlined_call_operand.vmem [shape: f32[1,16], index: 3, kind: input, shape index: {}]
  %s4 = inlined_call_operand.hbm [shape: bf16[2,8,2,8,8], index: 4, kind: output, shape index: {}]
  %s5 = sld [smem:[#allocation0]]
  $region49: #{tpu_custom_call.1} parent=0
    _
  %s7 = ssub.s32 1, %s5
  %s8 = scalar_select 0, %s7, %s5
  $region1: #{tpu_custom_call.1} parent=0
    #allocation3 [shape = 'u8[65536]{0}', space=vmem, size = 0x10000, scoped, tag = 'output window, operand 0']
    #allocation4 [shape = 's32[2]{0}', space=sflag, size = 0x8, scoped, tag = 'scoped memory for tpu_custom_call.1']
    %9 = vsyncpa [#allocation4], 0
    %s10 = scalar_lea.sflag [#allocation4], 1
    %11 = vsyncpa %s10, 0
    loop: start=0, step=1, limit=4
    $region2: #{tpu_custom_call.1} parent=1 // loop_pre_header
      _
    $region3: #{tpu_custom_call.1} parent=1 // loop_header
      %s13 = sphi 0, %s17
      %p14 = scmp.ge.s32.totalorder %s13, 4
      %s23 = sphi 0, %s25
      %s26 = sphi 0, %s23
      %s27 = sphi 0, %s26
      %s43 = sphi 0, %s27
      %s47 = sphi 0, %s47
      %s49 = sphi 0, %s47
      %s50 = sphi 0, %s49
      %s64 = sphi 0, %s50
      %s68 = sphi 0, %s68
      %s70 = sphi 0, %s68
      %s71 = sphi 0, %s70
      %s85 = sphi 0, %s71
      %s89 = sphi 0, %s89
      %s91 = sphi 0, %s89
      %s92 = sphi 0, %s91
      %s106 = sphi 0, %s92
      %s112 = sphi 0, %s114
      %s115 = sphi 0, %s112
      %s116 = sphi 0, %s115
      %s132 = sphi 0, %s116
    $region4: #{tpu_custom_call.1} parent=1 // loop_header_branch
      %16 = sbr.rel (%p14) target = $region8
    $region5: #{tpu_custom_call.1} parent=1 // loop_body
      %s18 = ssub.s32 %s13, 1
      %s19 = ssub.s32 %s13, 2
      %s20 = sadd.s32 %s13, 1
      %s21 = ssub.s32 %s13, %s20
      %p22 = scmp.eq.s32.totalorder %s21, 0
      %s24 = sadd.s32 %s23, 1
      %s25 = scalar_select %p22, %s23, %s24
      %p28 = pneg %p22
      %p29 = scmp.eq.s32.totalorder %s13, 1
      %p30 = por %p28, %p29
      %p31 = scmp.ne.s32.totalorder %s23, %s26
      %p32 = scmp.eq.s32.totalorder %s13, 0
      %p33 = por %p31, %p32
      %p34 = scmp.ne.s32.totalorder %s23, %s26
      %p35 = scmp.eq.s32.totalorder %s18, 1
      %p36 = por %p34, %p35
      %p37 = scmp.ne.s32.totalorder %s26, %s27
      %p38 = scmp.eq.s32.totalorder %s18, 0
      %p39 = por %p37, %p38
      %p40 = scmp.ne.s32.totalorder %s26, %s27
      %p41 = scmp.eq.s32.totalorder %s19, 1
      %p42 = por %p40, %p41
      %p44 = scmp.ne.s32.totalorder %s27, %s43
      %p45 = scmp.eq.s32.totalorder %s19, 0
      %p46 = por %p44, %p45
      %s48 = sadd.s32 %s47, 1
      %p51 = scmp.eq.s32.totalorder %s13, 1
      %p52 = scmp.ne.s32.totalorder %s47, %s49
      %p53 = scmp.eq.s32.totalorder %s13, 0
      %p54 = por %p52, %p53
      %p55 = scmp.ne.s32.totalorder %s47, %s49
      %p56 = scmp.eq.s32.totalorder %s18, 1
      %p57 = por %p55, %p56
      %p58 = scmp.ne.s32.totalorder %s49, %s50
      %p59 = scmp.eq.s32.totalorder %s18, 0
      %p60 = por %p58, %p59
      %p61 = scmp.ne.s32.totalorder %s49, %s50
      %p62 = scmp.eq.s32.totalorder %s19, 1
      %p63 = por %p61, %p62
      %p65 = scmp.ne.s32.totalorder %s50, %s64
      %p66 = scmp.eq.s32.totalorder %s19, 0
      %p67 = por %p65, %p66
      %s69 = sadd.s32 %s68, 1
      %p72 = scmp.eq.s32.totalorder %s13, 1
      %p73 = scmp.ne.s32.totalorder %s68, %s70
      %p74 = scmp.eq.s32.totalorder %s13, 0
      %p75 = por %p73, %p74
      %p76 = scmp.ne.s32.totalorder %s68, %s70
      %p77 = scmp.eq.s32.totalorder %s18, 1
      %p78 = por %p76, %p77
      %p79 = scmp.ne.s32.totalorder %s70, %s71
      %p80 = scmp.eq.s32.totalorder %s18, 0
      %p81 = por %p79, %p80
      %p82 = scmp.ne.s32.totalorder %s70, %s71
      %p83 = scmp.eq.s32.totalorder %s19, 1
      %p84 = por %p82, %p83
      %p86 = scmp.ne.s32.totalorder %s71, %s85
      %p87 = scmp.eq.s32.totalorder %s19, 0
      %p88 = por %p86, %p87
      %s90 = sadd.s32 %s89, 1
      %p93 = scmp.eq.s32.totalorder %s13, 1
      %p94 = scmp.ne.s32.totalorder %s89, %s91
      %p95 = scmp.eq.s32.totalorder %s13, 0
      %p96 = por %p94, %p95
      %p97 = scmp.ne.s32.totalorder %s89, %s91
      %p98 = scmp.eq.s32.totalorder %s18, 1
      %p99 = por %p97, %p98
      %p100 = scmp.ne.s32.totalorder %s91, %s92
      %p101 = scmp.eq.s32.totalorder %s18, 0
      %p102 = por %p100, %p101
      %p103 = scmp.ne.s32.totalorder %s91, %s92
      %p104 = scmp.eq.s32.totalorder %s19, 1
      %p105 = por %p103, %p104
      %p107 = scmp.ne.s32.totalorder %s92, %s106
      %p108 = scmp.eq.s32.totalorder %s19, 0
      %p109 = por %p107, %p108
      %s110 = ssub.s32 %s13, %s20
      %p111 = scmp.eq.s32.totalorder %s110, 0
      %s113 = sadd.s32 %s112, 1
      %s114 = scalar_select %p111, %s112, %s113
      %p117 = pneg %p111
      %p118 = scmp.eq.s32.totalorder %s13, 1
      %p119 = por %p117, %p118
      %p120 = scmp.ne.s32.totalorder %s112, %s115
      %p121 = scmp.eq.s32.totalorder %s13, 0
      %p122 = por %p120, %p121
      %p123 = scmp.ne.s32.totalorder %s112, %s115
      %p124 = scmp.eq.s32.totalorder %s18, 1
      %p125 = por %p123, %p124
      %p126 = scmp.ne.s32.totalorder %s115, %s116
      %p127 = scmp.eq.s32.totalorder %s18, 0
      %p128 = por %p126, %p127
      %p129 = scmp.ne.s32.totalorder %s115, %s116
      %p130 = scmp.eq.s32.totalorder %s19, 1
      %p131 = por %p129, %p130
      %p133 = scmp.ne.s32.totalorder %s116, %s132
      %p134 = scmp.eq.s32.totalorder %s19, 0
      %p135 = por %p133, %p134
      %p136 = scmp.le.s32.totalorder 1, %s13
      %p137 = scmp.lt.s32.totalorder %s13, 3
      %p138 = pnand %p136, %p137
      %p139 = pneg %p138
      // Predicated region
      $region9: #{tpu_custom_call.1} parent=5 // pred_check
        _
      $region10: #{tpu_custom_call.1} parent=5 // pred_check_branch
        %141 = sbr.rel (%p138) target = $region12
      $region11: #{tpu_custom_call.1} parent=5 // pred_region
        %s142 = ssub.s32 %s13, 1
        // Predicated region
        $region13: #{tpu_custom_call.1} parent=11 // pred_check
          %p143 = pneg %p60
        $region14: #{tpu_custom_call.1} parent=11 // pred_check_branch
          %145 = sbr.rel (%p143) target = $region16
        $region15: #{tpu_custom_call.1} parent=11 // pred_region
          _
        $region16: #{tpu_custom_call.1} parent=11 // pred_fallthru
          _
        // Predicated region
        $region17: #{tpu_custom_call.1} parent=11 // pred_check
          %p146 = pneg %p81
        $region18: #{tpu_custom_call.1} parent=11 // pred_check_branch
          %148 = sbr.rel (%p146) target = $region20
        $region19: #{tpu_custom_call.1} parent=11 // pred_region
          _
        $region20: #{tpu_custom_call.1} parent=11 // pred_fallthru
          _
        // Predicated region
        $region21: #{tpu_custom_call.1} parent=11 // pred_check
          %p149 = pneg %p102
        $region22: #{tpu_custom_call.1} parent=11 // pred_check_branch
          %151 = sbr.rel (%p149) target = $region24
        $region23: #{tpu_custom_call.1} parent=11 // pred_region
          _
        $region24: #{tpu_custom_call.1} parent=11 // pred_fallthru
          _
      $region12: #{tpu_custom_call.1} parent=5 // pred_fallthru
        _
      %p152 = scmp.lt.s32.totalorder %s13, 2
      // Predicated region
      $region25: #{tpu_custom_call.1} parent=5 // pred_check
        %p153 = pneg %p152
      $region26: #{tpu_custom_call.1} parent=5 // pred_check_branch
        %155 = sbr.rel (%p153) target = $region28
      $region27: #{tpu_custom_call.1} parent=5 // pred_region
        // Predicated region
        $region29: #{tpu_custom_call.1} parent=27 // pred_check
          %p156 = pneg %p33
        $region30: #{tpu_custom_call.1} parent=27 // pred_check_branch
          %158 = sbr.rel (%p156) target = $region32
        $region31: #{tpu_custom_call.1} parent=27 // pred_region
          %p159 = scmp.lt.s32.totalorder %s13, 1
          %s160 = scalar_select %p159, %s13, 1
          %s161 = smul.addr %s160, 8
          %s162 = smul.addr %s161, 4
          %s163 = scalar_lea.vmem %s0, %s162
        $region32: #{tpu_custom_call.1} parent=27 // pred_fallthru
          _
      $region28: #{tpu_custom_call.1} parent=5 // pred_fallthru
        _
      %p164 = scmp.le.s32.totalorder 1, %s13
      %p165 = scmp.lt.s32.totalorder %s13, 3
      %p166 = pnand %p164, %p165
      %p167 = pneg %p166
      // Predicated region
      $region33: #{tpu_custom_call.1} parent=5 // pred_check
        _
      $region34: #{tpu_custom_call.1} parent=5 // pred_check_branch
        %169 = sbr.rel (%p166) target = $region36
      $region35: #{tpu_custom_call.1} parent=5 // pred_region
        %s170 = ssub.s32 %s13, 1
        %p171 = scmp.lt.s32.totalorder %s18, 1
        %s172 = scalar_select %p171, %s18, 1
        %s173 = smul.addr %s172, 8
        %s174 = smul.addr %s173, 4
        %s175 = scalar_lea.vmem %s0, %s174
        %p176 = pneg %p39
        %p177 = pneg %p36
        %p178 = pneg %p60
        %p179 = pneg %p57
        %p180 = pneg %p81
        %p181 = pneg %p78
        %p182 = pneg %p102
        %p183 = pneg %p99
        %p184 = pneg %p128
        %p185 = pneg %p125
        %s186 = sand.u32 %s115, 1
        %s187 = scalar_lea.sflag [#allocation4], %s186
        %s188 = sand.u32 %s115, 1
        %s189 = smul.addr %s188, 64
        %s190 = scalar_lea.vmem [#allocation3], %s189
        %p191 = scmp.lt.s32.totalorder %s18, 1
        %s192 = scalar_select %p191, %s18, 1
        %s193 = smul.addr %s192, 8
        %s194 = smul.addr %s193, 4
        %s195 = scalar_lea.vmem %s0, %s194
        %v197 = vlaneseq
        %v198 = vshrl.u32 %v197, 7
        %v199 = vadd.s32 %v198, 8
        %v200 = vadd.s32 %v198, 16
        %v201 = vadd.s32 %v198, 24
        %v202 = vadd.s32 %v198, 32
        %v203 = vadd.s32 %v198, 40
        %v204 = vadd.s32 %v198, 48
        %v205 = vadd.s32 %v198, 56
        %vm206 = vcmp.lt.s32.totalorder %v198, 0
        %v207 = vsub.s32 0, %v198
        %v208 = vsel %vm206, %v207, %v198
        %v209 = vshrl.u32 %v208, 3
        %v210 = vand.u32 %v208, 7
        %v211 = vsub.s32 0, %v210
        %v212 = vsel %vm206, %v211, %v210
        %vm213 = vcmp.lt.s32.totalorder %v199, 0
        %v214 = vsub.s32 0, %v199
        %v215 = vsel %vm213, %v214, %v199
        %v216 = vshrl.u32 %v215, 3
        %v217 = vand.u32 %v215, 7
        %v218 = vsub.s32 0, %v217
        %v219 = vsel %vm213, %v218, %v217
        %vm220 = vcmp.lt.s32.totalorder %v200, 0
        %v221 = vsub.s32 0, %v200
        %v222 = vsel %vm220, %v221, %v200
        %v223 = vshrl.u32 %v222, 3
        %v224 = vand.u32 %v222, 7
        %v225 = vsub.s32 0, %v224
        %v226 = vsel %vm220, %v225, %v224
        %vm227 = vcmp.lt.s32.totalorder %v201, 0
        %v228 = vsub.s32 0, %v201
        %v229 = vsel %vm227, %v228, %v201
        %v230 = vshrl.u32 %v229, 3
        %v231 = vand.u32 %v229, 7
        %v232 = vsub.s32 0, %v231
        %v233 = vsel %vm227, %v232, %v231
        %vm234 = vcmp.lt.s32.totalorder %v202, 0
        %v235 = vsub.s32 0, %v202
        %v236 = vsel %vm234, %v235, %v202
        %v237 = vshrl.u32 %v236, 3
        %v238 = vand.u32 %v236, 7
        %v239 = vsub.s32 0, %v238
        %v240 = vsel %vm234, %v239, %v238
        %vm241 = vcmp.lt.s32.totalorder %v203, 0
        %v242 = vsub.s32 0, %v203
        %v243 = vsel %vm241, %v242, %v203
        %v244 = vshrl.u32 %v243, 3
        %v245 = vand.u32 %v243, 7
        %v246 = vsub.s32 0, %v245
        %v247 = vsel %vm241, %v246, %v245
        %vm248 = vcmp.lt.s32.totalorder %v204, 0
        %v249 = vsub.s32 0, %v204
        %v250 = vsel %vm248, %v249, %v204
        %v251 = vshrl.u32 %v250, 3
        %v252 = vand.u32 %v250, 7
        %v253 = vsub.s32 0, %v252
        %v254 = vsel %vm248, %v253, %v252
        %vm255 = vcmp.lt.s32.totalorder %v205, 0
        %v256 = vsub.s32 0, %v205
        %v257 = vsel %vm255, %v256, %v205
        %v258 = vshrl.u32 %v257, 3
        %v259 = vand.u32 %v257, 7
        %v260 = vsub.s32 0, %v259
        %v261 = vsel %vm255, %v260, %v259
        %vm262 = vcmp.ne.s32.totalorder %v212, 0
        %vm263 = vcmp.ne.s32.totalorder %v219, 0
        %vm264 = vcmp.ne.s32.totalorder %v226, 0
        %vm265 = vcmp.ne.s32.totalorder %v233, 0
        %vm266 = vcmp.ne.s32.totalorder %v240, 0
        %vm267 = vcmp.ne.s32.totalorder %v247, 0
        %vm268 = vcmp.ne.s32.totalorder %v254, 0
        %vm269 = vcmp.ne.s32.totalorder %v261, 0
        %vm270 = vcmp.lt.s32.totalorder %v212, 0
        %vm271 = vcmp.lt.s32.totalorder %v219, 0
        %vm272 = vcmp.lt.s32.totalorder %v226, 0
        %vm273 = vcmp.lt.s32.totalorder %v233, 0
        %vm274 = vcmp.lt.s32.totalorder %v240, 0
        %vm275 = vcmp.lt.s32.totalorder %v247, 0
        %vm276 = vcmp.lt.s32.totalorder %v254, 0
        %vm277 = vcmp.lt.s32.totalorder %v261, 0
        %vm278 = vmand %vm270, %vm262
        %vm279 = vmand %vm271, %vm263
        %vm280 = vmand %vm272, %vm264
        %vm281 = vmand %vm273, %vm265
        %vm282 = vmand %vm274, %vm266
        %vm283 = vmand %vm275, %vm267
        %vm284 = vmand %vm276, %vm268
        %vm285 = vmand %vm277, %vm269
        %v286 = vadd.s32 %v212, 8
        %v287 = vadd.s32 %v219, 8
        %v288 = vadd.s32 %v226, 8
        %v289 = vadd.s32 %v233, 8
        %v290 = vadd.s32 %v240, 8
        %v291 = vadd.s32 %v247, 8
        %v292 = vadd.s32 %v254, 8
        %v293 = vadd.s32 %v261, 8
        %v294 = vsel %vm278, %v286, %v212
        %v295 = vsel %vm279, %v287, %v219
        %v296 = vsel %vm280, %v288, %v226
        %v297 = vsel %vm281, %v289, %v233
        %v298 = vsel %vm282, %v290, %v240
        %v299 = vsel %vm283, %v291, %v247
        %v300 = vsel %vm284, %v292, %v254
        %v301 = vsel %vm285, %v293, %v261
        %vm302 = vcmp.lt.s32.totalorder %v294, 7
        %vm303 = vcmp.lt.s32.totalorder %v295, 7
        %vm304 = vcmp.lt.s32.totalorder %v296, 7
        %vm305 = vcmp.lt.s32.totalorder %v297, 7
        %vm306 = vcmp.lt.s32.totalorder %v298, 7
        %vm307 = vcmp.lt.s32.totalorder %v299, 7
        %vm308 = vcmp.lt.s32.totalorder %v300, 7
        %vm309 = vcmp.lt.s32.totalorder %v301, 7
        %v310 = vsel %vm302, 1, 0
        %v311 = vsel %vm303, 1, 0
        %v312 = vsel %vm304, 1, 0
        %v313 = vsel %vm305, 1, 0
        %v314 = vsel %vm306, 1, 0
        %v315 = vsel %vm307, 1, 0
        %v316 = vsel %vm308, 1, 0
        %v317 = vsel %vm309, 1, 0
        %v318 = vcvt.s32.f32 %v310
        %v319 = vcvt.s32.f32 %v311
        %v320 = vcvt.s32.f32 %v312
        %v321 = vcvt.s32.f32 %v313
        %v322 = vcvt.s32.f32 %v314
        %v323 = vcvt.s32.f32 %v315
        %v324 = vcvt.s32.f32 %v316
        %v325 = vcvt.s32.f32 %v317
        %v326 = vld [vmem:[%s195] sm:$0xf]
        %v327 = vld [vmem:[%s195 + $0x4] sm:$0xf]
        %v328 = vld [vmem:[%s195 + $0x8] sm:$0xf]
        %v329 = vld [vmem:[%s195 + $0xc] sm:$0xf]
        %v330 = vld [vmem:[%s195 + $0x10] sm:$0xf]
        %v331 = vld [vmem:[%s195 + $0x14] sm:$0xf]
        %v332 = vld [vmem:[%s195 + $0x18] sm:$0xf]
        %v333 = vld [vmem:[%s195 + $0x1c] sm:$0xf]
        %vm334 = vcmask 64519
        %vm335 = vsmask.f32 7966
        %vm336 = vmand %vm334, %vm335
        %v337 = vld [vmem:[#allocation2] sm:$0x80]
        %v338 = vsel %vm336, 0, %v337
        %339 = vst [vmem:[#allocation2] sm:$0x80] %v338
        %vm340 = vcmask 57344
        %vm341 = vsmask.f32 256
        %vm342 = vmand %vm340, %vm341
        %v343 = vld [vmem:[#allocation2 + $0x28] sm:$0x1]
        %v344 = vsel %vm342, 0, %v343
        %345 = vst [vmem:[#allocation2 + $0x28] sm:$0x1] %v344
        %v354 = vunpack.c.l.b16 %v326
        %v355 = vunpack.c.l.b16 %v327
        %v356 = vunpack.c.l.b16 %v328
        %v357 = vunpack.c.l.b16 %v329
        %v358 = vunpack.c.l.b16 %v330
        %v359 = vunpack.c.l.b16 %v331
        %v360 = vunpack.c.l.b16 %v332
        %v361 = vunpack.c.l.b16 %v333
        %v362 = vpack.c.b16 %v355, %v354
        %v363 = vpack.c.b16 %v357, %v356
        %v364 = vpack.c.b16 %v359, %v358
        %v365 = vpack.c.b16 %v361, %v360
        %vm370 = vcmask 64512
        %371 = vst.msk [vmem:[#allocation2 + $0x8] sm:$0xff] %vm370, %v362
        %372 = vst.msk [vmem:[#allocation2 + $0x10] sm:$0xff] %vm370, %v363
        %373 = vst.msk [vmem:[#allocation2 + $0x18] sm:$0xff] %vm370, %v364
        %374 = vst.msk [vmem:[#allocation2 + $0x20] sm:$0xff] %vm370, %v365
        %vm375 = vcmask 130116
        %376 = vst.msk [vmem:[#allocation2 + $0x20] sm:$0xf0] %vm375, 0
        %vm377 = vcmask 122944
        %vm378 = vmand %vm377, %vm341
        %v379 = vld [vmem:[#allocation2 + $0x28] sm:$0x1]
        %v380 = vsel %vm378, 0, %v379
        %381 = vst [vmem:[#allocation2 + $0x28] sm:$0x1] %v380
        %v382 = vpack.c.b16 %v354, %v354
        %v383 = vpack.c.b16 %v356, %v355
        %v384 = vpack.c.b16 %v358, %v357
        %v385 = vpack.c.b16 %v360, %v359
        %v386 = vpack.c.b16 %v361, %v361
        %387 = vrot.lane.b32.xlu0 %v382, 8
        %v388 = vpop.permute.xlu0 %387
        %389 = vrot.lane.b32.xlu0 %v383, 8
        %v390 = vpop.permute.xlu0 %389
        %391 = vrot.lane.b32.xlu0 %v384, 8
        %v392 = vpop.permute.xlu0 %391
        %393 = vrot.lane.b32.xlu0 %v385, 8
        %v394 = vpop.permute.xlu0 %393
        %395 = vrot.lane.b32.xlu0 %v386, 8
        %v396 = vpop.permute.xlu0 %395
        %402 = vst.msk [vmem:[#allocation2] sm:$0xf0] %vm375, %v388
        %vm403 = vcmask 130112
        %404 = vst.msk [vmem:[#allocation2 + $0x8] sm:$0xff] %vm403, %v390
        %405 = vst.msk [vmem:[#allocation2 + $0x10] sm:$0xff] %vm403, %v392
        %406 = vst.msk [vmem:[#allocation2 + $0x18] sm:$0xff] %vm403, %v394
        %vm407 = vcmask 126016
        %408 = vst.msk [vmem:[#allocation2 + $0x20] sm:$0xf] %vm407, %v396
        %v409 = vld [vmem:[#allocation2 + $0x8] sm:$0xff]
        %v410 = vld [vmem:[#allocation2 + $0x10] sm:$0xff]
        %v411 = vld [vmem:[#allocation2 + $0x18] sm:$0xff]
        %v412 = vld [vmem:[#allocation2 + $0x20] sm:$0xff]
        %v413 = vld [vmem:[%s1] sm:$0xf]
        %v414 = vld [vmem:[%s1 + $0x4] sm:$0xf]
        %v415 = vld [vmem:[#allocation2 + $0x28] sm:$0x1]
        %s416 = scalar_lea.vmem %s1, 8
        %v417 = vld [vmem:[%s416] sm:$0xf]
        %v418 = vld [vmem:[%s416 + $0x4] sm:$0xf]
        %vm419 = vsmask.f32 7424
        %v421 = vshrl.u32 %v409, 16
        %v423 = vshll.u32 %v409, 16
        %v425 = vrot.slane %v423, 1
        %v426 = vor.u32 %v421, %v425
        %v428 = vshll.u32 %v410, 16
        %v430 = vrot.slane %v428, 1
        %v431 = vsel %vm419, %v426, %v430
        %v432 = vshrl.u32 %v410, 16
        %v434 = vor.u32 %v432, %v430
        %v436 = vshll.u32 %v411, 16
        %v438 = vrot.slane %v436, 1
        %v439 = vsel %vm419, %v434, %v438
        %v440 = vshrl.u32 %v411, 16
        %v442 = vor.u32 %v440, %v438
        %v444 = vshll.u32 %v412, 16
        %v446 = vrot.slane %v444, 1
        %v447 = vsel %vm419, %v442, %v446
        %v448 = vshrl.u32 %v412, 16
        %v450 = vor.u32 %v448, %v446
        %v452 = vshll.u32 %v415, 16
        %v454 = vrot.slane %v452, 1
        %v455 = vsel %vm419, %v450, %v454
        %v458 = vunpack.c.l.b16 %v417
        %v459 = vunpack.c.l.b16 %v418
        %v460 = vpack.c.b16 %v459, %v458
        %vm462 = vcmask 130048
        %v464 = vsel %vm462, %v431, 0
        %v467 = vsel %vm462, %v439, 0
        %v470 = vsel %vm462, %v447, 0
        %v473 = vsel %vm462, %v455, 0
        %475 = vmatprep.subr.bf16.mxu0 0
        %476 = vmatpush1.bf16.msra.mxu0 %v460
        %477 = vmatprep.subr.bf16.mxu0 0
        %478 = vmatpush1.bf16.msra.mxu0 0
        %479 = vmatprep.subr.bf16.mxu0 0
        %480 = vmatpush1.bf16.msra.mxu0 0
        %481 = vmatprep.subr.bf16.mxu0 0
        %482 = vmatpush1.bf16.msra.mxu0 0
        %483 = vmatprep.subr.bf16.mxu0 0
        %484 = vmatpush1.bf16.msra.mxu0 0
        %485 = vmatprep.subr.bf16.mxu0 0
        %486 = vmatpush1.bf16.msra.mxu0 0
        %487 = vmatprep.subr.bf16.mxu0 0
        %488 = vmatpush1.bf16.msra.mxu0 0
        %489 = vmatprep.subr.bf16.mxu0 0
        %490 = vmatpush1.bf16.msra.mxu0 0
        %491 = vmatprep.subr.bf16.mxu0 0
        %492 = vmatpush1.bf16.msra.mxu0 0
        %493 = vmatprep.subr.bf16.mxu0 0
        %494 = vmatpush1.bf16.msra.mxu0 0
        %495 = vmatprep.subr.bf16.mxu0 0
        %496 = vmatpush1.bf16.msra.mxu0 0
        %497 = vmatprep.subr.bf16.mxu0 0
        %498 = vmatpush1.bf16.msra.mxu0 0
        %499 = vmatprep.subr.bf16.mxu0 0
        %500 = vmatpush1.bf16.msra.mxu0 0
        %501 = vmatprep.subr.bf16.mxu0 0
        %502 = vmatpush1.bf16.msra.mxu0 0
        %503 = vmatprep.subr.bf16.mxu0 0
        %504 = vmatpush1.bf16.msra.mxu0 0
        %505 = vmatprep.subr.bf16.mxu0 0
        %506 = vmatpush1.bf16.msra.mxu0 0
        %507 = vmatprep.mubr.bf16.mxu0 0
        %508 = vmatmul.mubr.bf16.gmra.mrb[0].mxu0 %v464
        %v509 = vpop.f32.mrb[0].mxu0
        %v510 = vadd.f32 0.0, %v509
        %v511 = vpop.f32.mrb[0].mxu0
        %v512 = vpop.f32.mrb[0].mxu0
        %v513 = vadd.f32 0.0, %v512
        %v514 = vpop.f32.mrb[0].mxu0
        %515 = vmatprep.mubr.bf16.mxu0 0
        %516 = vmatmul.mubr.bf16.gmra.mrb[0].mxu0 %v467
        %v517 = vpop.f32.mrb[0].mxu0
        %v518 = vadd.f32 0.0, %v517
        %v519 = vpop.f32.mrb[0].mxu0
        %v520 = vpop.f32.mrb[0].mxu0
        %v521 = vadd.f32 0.0, %v520
        %v522 = vpop.f32.mrb[0].mxu0
        %523 = vmatprep.mubr.bf16.mxu0 0
        %524 = vmatmul.mubr.bf16.gmra.mrb[0].mxu0 %v470
        %v525 = vpop.f32.mrb[0].mxu0
        %v526 = vadd.f32 0.0, %v525
        %v527 = vpop.f32.mrb[0].mxu0
        %v528 = vpop.f32.mrb[0].mxu0
        %v529 = vadd.f32 0.0, %v528
        %v530 = vpop.f32.mrb[0].mxu0
        %531 = vmatprep.mubr.bf16.mxu0 0
        %532 = vmatmul.mubr.bf16.gmra.mrb[0].mxu0 %v473
        %v533 = vpop.f32.mrb[0].mxu0
        %v534 = vadd.f32 0.0, %v533
        %v535 = vpop.f32.mrb[0].mxu0
        %v536 = vpop.f32.mrb[0].mxu0
        %v537 = vadd.f32 0.0, %v536
        %v538 = vpop.f32.mrb[0].mxu0
        %539 = vdwg.mxu0
        %v540 = vmul.f32 %v510, %v318
        %v541 = vmul.f32 %v513, %v319
        %v542 = vmul.f32 %v518, %v320
        %v543 = vmul.f32 %v521, %v321
        %v544 = vmul.f32 %v526, %v322
        %v545 = vmul.f32 %v529, %v323
        %v546 = vmul.f32 %v534, %v324
        %v547 = vmul.f32 %v537, %v325
        %v550 = vunpack.c.l.b16 %v413
        %v551 = vunpack.c.l.b16 %v414
        %v552 = vpack.c.b16 %v551, %v550
        %v554 = vsel %vm462, %v409, 0
        %v556 = vsel %vm462, %v410, 0
        %v558 = vsel %vm462, %v411, 0
        %v560 = vsel %vm462, %v412, 0
        %562 = vmatprep.subr.bf16.mxu0 0
        %563 = vmatpush1.bf16.msra.mxu0 %v552
        %564 = vmatprep.subr.bf16.mxu0 0
        %565 = vmatpush1.bf16.msra.mxu0 0
        %566 = vmatprep.subr.bf16.mxu0 0
        %567 = vmatpush1.bf16.msra.mxu0 0
        %568 = vmatprep.subr.bf16.mxu0 0
        %569 = vmatpush1.bf16.msra.mxu0 0
        %570 = vmatprep.subr.bf16.mxu0 0
        %571 = vmatpush1.bf16.msra.mxu0 0
        %572 = vmatprep.subr.bf16.mxu0 0
        %573 = vmatpush1.bf16.msra.mxu0 0
        %574 = vmatprep.subr.bf16.mxu0 0
        %575 = vmatpush1.bf16.msra.mxu0 0
        %576 = vmatprep.subr.bf16.mxu0 0
        %577 = vmatpush1.bf16.msra.mxu0 0
        %578 = vmatprep.subr.bf16.mxu0 0
        %579 = vmatpush1.bf16.msra.mxu0 0
        %580 = vmatprep.subr.bf16.mxu0 0
        %581 = vmatpush1.bf16.msra.mxu0 0
        %582 = vmatprep.subr.bf16.mxu0 0
        %583 = vmatpush1.bf16.msra.mxu0 0
        %584 = vmatprep.subr.bf16.mxu0 0
        %585 = vmatpush1.bf16.msra.mxu0 0
        %586 = vmatprep.subr.bf16.mxu0 0
        %587 = vmatpush1.bf16.msra.mxu0 0
        %588 = vmatprep.subr.bf16.mxu0 0
        %589 = vmatpush1.bf16.msra.mxu0 0
        %590 = vmatprep.subr.bf16.mxu0 0
        %591 = vmatpush1.bf16.msra.mxu0 0
        %592 = vmatprep.subr.bf16.mxu0 0
        %593 = vmatpush1.bf16.msra.mxu0 0
        %594 = vmatprep.mubr.bf16.mxu0 0
        %595 = vmatmul.mubr.bf16.gmra.mrb[0].mxu0 %v554
        %v596 = vpop.f32.mrb[0].mxu0
        %v597 = vadd.f32 %v540, %v596
        %v598 = vpop.f32.mrb[0].mxu0
        %v599 = vpop.f32.mrb[0].mxu0
        %v600 = vadd.f32 %v541, %v599
        %v601 = vpop.f32.mrb[0].mxu0
        %602 = vmatprep.mubr.bf16.mxu0 0
        %603 = vmatmul.mubr.bf16.gmra.mrb[0].mxu0 %v556
        %v604 = vpop.f32.mrb[0].mxu0
        %v605 = vadd.f32 %v542, %v604
        %v606 = vpop.f32.mrb[0].mxu0
        %v607 = vpop.f32.mrb[0].mxu0
        %v608 = vadd.f32 %v543, %v607
        %v609 = vpop.f32.mrb[0].mxu0
        %610 = vmatprep.mubr.bf16.mxu0 0
        %611 = vmatmul.mubr.bf16.gmra.mrb[0].mxu0 %v558
        %v612 = vpop.f32.mrb[0].mxu0
        %v613 = vadd.f32 %v544, %v612
        %v614 = vpop.f32.mrb[0].mxu0
        %v615 = vpop.f32.mrb[0].mxu0
        %v616 = vadd.f32 %v545, %v615
        %v617 = vpop.f32.mrb[0].mxu0
        %618 = vmatprep.mubr.bf16.mxu0 0
        %619 = vmatmul.mubr.bf16.gmra.mrb[0].mxu0 %v560
        %v620 = vpop.f32.mrb[0].mxu0
        %v621 = vadd.f32 %v546, %v620
        %v622 = vpop.f32.mrb[0].mxu0
        %v623 = vpop.f32.mrb[0].mxu0
        %v624 = vadd.f32 %v547, %v623
        %v625 = vpop.f32.mrb[0].mxu0
        %626 = vdwg.mxu0
        %v627 = vld [vmem:[%s2] sm:$0x1]
        %v629 = vlaneseq
        %v630 = vshrl.u32 %v629, 7
        %v631 = vsub.s32 0, %v630
        %v632 = vrot.slane %v627, %v631
        %v634 = vmul.f32 %v597, %v632
        %v635 = vmul.f32 %v600, %v632
        %v636 = vmul.f32 %v605, %v632
        %v637 = vmul.f32 %v608, %v632
        %v638 = vmul.f32 %v613, %v632
        %v639 = vmul.f32 %v616, %v632
        %v640 = vmul.f32 %v621, %v632
        %v641 = vmul.f32 %v624, %v632
        %v642 = vld [vmem:[%s3] sm:$0x1]
        %v644 = vlaneseq
        %v645 = vshrl.u32 %v644, 7
        %v646 = vsub.s32 0, %v645
        %v647 = vrot.slane %v642, %v646
        %v649 = vadd.f32 %v634, %v647
        %v650 = vadd.f32 %v635, %v647
        %v651 = vadd.f32 %v636, %v647
        %v652 = vadd.f32 %v637, %v647
        %v653 = vadd.f32 %v638, %v647
        %v654 = vadd.f32 %v639, %v647
        %v655 = vadd.f32 %v640, %v647
        %v656 = vadd.f32 %v641, %v647
        %v657 = vmax.f32 %v649, 0.0
        %v658 = vmax.f32 %v650, 0.0
        %v659 = vmax.f32 %v651, 0.0
        %v660 = vmax.f32 %v652, 0.0
        %v661 = vmax.f32 %v653, 0.0
        %v662 = vmax.f32 %v654, 0.0
        %v663 = vmax.f32 %v655, 0.0
        %v664 = vmax.f32 %v656, 0.0
        %v665 = vpack.c.bf16 %v658, %v657
        %v666 = vpack.c.bf16 %v660, %v659
        %v667 = vpack.c.bf16 %v662, %v661
        %v668 = vpack.c.bf16 %v664, %v663
        %v673 = vunpack.c.l.b16 %v665
        %v674 = vunpack.c.h.b16 %v665
        %v675 = vunpack.c.l.b16 %v666
        %v676 = vunpack.c.h.b16 %v666
        %v677 = vunpack.c.l.b16 %v667
        %v678 = vunpack.c.h.b16 %v667
        %v679 = vunpack.c.l.b16 %v668
        %v680 = vunpack.c.h.b16 %v668
        %v681 = vpack.c.b16 %v673, %v673
        %v682 = vpack.c.b16 %v674, %v674
        %v683 = vpack.c.b16 %v675, %v675
        %v684 = vpack.c.b16 %v676, %v676
        %v685 = vpack.c.b16 %v677, %v677
        %v686 = vpack.c.b16 %v678, %v678
        %v687 = vpack.c.b16 %v679, %v679
        %v688 = vpack.c.b16 %v680, %v680
        %vm697 = vcmask 60416
        %698 = vst.msk [vmem:[%s190] sm:$0xf] %vm697, %v681
        %699 = vst.msk [vmem:[%s190 + $0x8] sm:$0xf] %vm697, %v682
        %700 = vst.msk [vmem:[%s190 + $0x10] sm:$0xf] %vm697, %v683
        %701 = vst.msk [vmem:[%s190 + $0x18] sm:$0xf] %vm697, %v684
        %702 = vst.msk [vmem:[%s190 + $0x20] sm:$0xf] %vm697, %v685
        %703 = vst.msk [vmem:[%s190 + $0x28] sm:$0xf] %vm697, %v686
        %704 = vst.msk [vmem:[%s190 + $0x30] sm:$0xf] %vm697, %v687
        %705 = vst.msk [vmem:[%s190 + $0x38] sm:$0xf] %vm697, %v688
        %706 = vrot.lane.b32.xlu0 %v681, 120
        %v707 = vpop.permute.xlu0 %706
        %708 = vrot.lane.b32.xlu0 %v682, 120
        %v709 = vpop.permute.xlu0 %708
        %710 = vrot.lane.b32.xlu0 %v683, 120
        %v711 = vpop.permute.xlu0 %710
        %712 = vrot.lane.b32.xlu0 %v684, 120
        %v713 = vpop.permute.xlu0 %712
        %714 = vrot.lane.b32.xlu0 %v685, 120
        %v715 = vpop.permute.xlu0 %714
        %716 = vrot.lane.b32.xlu0 %v686, 120
        %v717 = vpop.permute.xlu0 %716
        %718 = vrot.lane.b32.xlu0 %v687, 120
        %v719 = vpop.permute.xlu0 %718
        %720 = vrot.lane.b32.xlu0 %v688, 120
        %v721 = vpop.permute.xlu0 %720
        %s730 = scalar_lea.vmem %s190, 4 [#allocation3]
        %731 = vst.msk [vmem:[%s730] sm:$0xf] %vm697, %v707
        %732 = vst.msk [vmem:[%s730 + $0x8] sm:$0xf] %vm697, %v709
        %733 = vst.msk [vmem:[%s730 + $0x10] sm:$0xf] %vm697, %v711
        %734 = vst.msk [vmem:[%s730 + $0x18] sm:$0xf] %vm697, %v713
        %735 = vst.msk [vmem:[%s730 + $0x20] sm:$0xf] %vm697, %v715
        %736 = vst.msk [vmem:[%s730 + $0x28] sm:$0xf] %vm697, %v717
        %737 = vst.msk [vmem:[%s730 + $0x30] sm:$0xf] %vm697, %v719
        %738 = vst.msk [vmem:[%s730 + $0x38] sm:$0xf] %vm697, %v721
        %s739 = sand.u32 %s115, 1
        %s740 = scalar_lea.sflag [#allocation4], %s739
        %s741 = sand.u32 %s115, 1
        %s742 = smul.addr %s741, 64
        %s743 = scalar_lea.vmem [#allocation3], %s742
        // Predicated region
        $region37: #{tpu_custom_call.1} parent=35 // pred_check
          %p744 = pneg %p125
        $region38: #{tpu_custom_call.1} parent=35 // pred_check_branch
          %746 = sbr.rel (%p744) target = $region40
        $region39: #{tpu_custom_call.1} parent=35 // pred_region
          %s748 = ssub.s32 1024, 1024
          %749 = vsyncadd %s740, %s748
          %s750 = smul.addr %s18, 16
          %s751 = smul.addr %s750, 64
          %s752 = scalar_lea.hbm %s4, %s751
          %s753 = sshll.u32 %s743, 4
          %s754 = int_to_ptr.vmem [resolvable:$true] %s753
          %759 = dma.vmem_to_hbm [thread:$0]  %s754, 1024, %s752, %s740, 64, 64, 4
        $region40: #{tpu_custom_call.1} parent=35 // pred_fallthru
          _
      $region36: #{tpu_custom_call.1} parent=5 // pred_fallthru
        _
      %p760 = scmp.le.s32.totalorder 2, %s13
      // Predicated region
      $region41: #{tpu_custom_call.1} parent=5 // pred_check
        %p761 = pneg %p760
      $region42: #{tpu_custom_call.1} parent=5 // pred_check_branch
        %763 = sbr.rel (%p761) target = $region44
      $region43: #{tpu_custom_call.1} parent=5 // pred_region
        %s764 = ssub.s32 %s13, 2
        // Predicated region
        $region45: #{tpu_custom_call.1} parent=43 // pred_check
          %p765 = pneg %p131
        $region46: #{tpu_custom_call.1} parent=43 // pred_check_branch
          %767 = sbr.rel (%p765) target = $region48
        $region47: #{tpu_custom_call.1} parent=43 // pred_region
          %s768 = sand.u32 %s116, 1
          %s769 = scalar_lea.sflag [#allocation4], %s768
          %s770 = sand.u32 %s116, 1
          %s771 = smul.addr %s770, 64
          %s772 = scalar_lea.vmem [#allocation3], %s771
          %773 = dma.done %s769, 1024
        $region48: #{tpu_custom_call.1} parent=43 // pred_fallthru
          _
      $region44: #{tpu_custom_call.1} parent=5 // pred_fallthru
        _
    $region6: #{tpu_custom_call.1} parent=1 // loop_footer
      %s17 = sadd.s32 1, %s13
    $region7: #{tpu_custom_call.1} parent=1 // loop_footer_branch
      %12 = sbr.rel target = $region3
    $region8: #{tpu_custom_call.1} parent=1 // loop_exit
      _
    %774 = vsyncpa [#allocation4], 1
    %s775 = scalar_lea.sflag [#allocation4], 1
    %776 = vsyncpa %s775, 1

</llo_original>
